<compile_context>
chip_gen: v7x
topology: tpu7x:2x2x1
jax: 0.10.0
libtpu: 0.0.40
codegen_flags: <defaults>
</compile_context>

<pallas_src>
import jax
import jax.numpy as jnp
from jax.experimental import pallas as pl
from jax.experimental.pallas import tpu as pltpu


# Tile-sizing budget + explicit scoped-VMEM limit (conservative across
# v5e / v6e (128 MiB physical) and v7x (64 MiB physical per TC)).
_VMEM_BUDGET_BYTES = 24 * 1024 * 1024
_VMEM_LIMIT_BYTES = 48 * 1024 * 1024
_MAX_TILE_N = 8192  # diminishing returns past a few thousand lanes


def _round_up(x: int, m: int) -> int:
    return ((x + m - 1) // m) * m


def _choose_tile_n(c: int, r_pad: int, x_bytes: int, o_bytes: int, n: int) -> int:
    """Largest lane-dense N tile whose double-buffered in+out fits the budget."""
    per_col = 2 * c * x_bytes + 2 * r_pad * o_bytes  # 2x input + 2x output buffers
    max_cols = max(_VMEM_BUDGET_BYTES // per_col, 128)
    tn = (max_cols // 128) * 128
    tn = min(tn, _MAX_TILE_N)
    tn = min(tn, _round_up(n, 128))  # don't over-pad tiny inputs
    return max(tn, 128)


def _group_pool_kernel(w_ref, x_ref, o_ref):
    # w_ref: (R_pad, C)  normalized region-membership weights (resident)
    # x_ref: (C, tN)     one N tile of the channel-major input
    # o_ref: (R_pad, tN) region-pooled output tile (lane-dense)
    # Memory-bound tall-skinny matmul; MXU accumulates in f32 regardless of
    # the (possibly bf16) input dtype.
    o_ref[...] = jnp.dot(
        w_ref[...], x_ref[...], preferred_element_type=jnp.float32
    ).astype(o_ref.dtype)


def group_mean_pool(
    x: jax.Array,
    membership: jax.Array,
    *,
    compute_dtype=jnp.float32,
    out_dtype=jnp.float32,
) -> jax.Array:
    """Region-wise mean pooling over channels.

    Args:
      x:             (B, C, T) input time series.
      membership:    (R, C) 0/1 matrix; membership[r, c] == 1 iff channel c
                     belongs to region r.
      compute_dtype: dtype for x / W inside the kernel (bf16 halves HBM bytes).
      out_dtype:     dtype of the pooled output.
    Returns:
      (B, R, T): per-region mean over member channels.
    """
    B, C, T = x.shape
    R, C2 = membership.shape
    assert C == C2

    # Normalize membership -> mean weights (plain-JAX glue, done once).
    counts = jnp.maximum(membership.sum(axis=1, keepdims=True), 1.0)
    w = membership.astype(jnp.float32) / counts

    # Pad regions to a multiple of 8 -> sublane-dense output stores.
    R_pad = _round_up(R, 8)
    if R_pad != R:
        w = jnp.pad(w, ((0, R_pad - R), (0, 0)))
    w = w.astype(compute_dtype)

    # Fold batch into the matmul N dimension (layout plumbing in the wrapper;
    # upstream could supply (C, B*T) directly).
    N = B * T
    x2d = jnp.transpose(x, (1, 0, 2)).reshape(C, N).astype(compute_dtype)

    x_bytes = jnp.dtype(compute_dtype).itemsize
    o_bytes = jnp.dtype(out_dtype).itemsize
    tn = _choose_tile_n(C, R_pad, x_bytes, o_bytes, N)
    N_pad = _round_up(N, tn)
    if N_pad != N:
        x2d = jnp.pad(x2d, ((0, 0), (0, N_pad - N)))

    grid = (N_pad // tn,)

    cost = pl.CostEstimate(
        flops=2 * R_pad * C * N_pad,
        transcendentals=0,
        bytes_accessed=x_bytes * (C * N_pad + R_pad * C) + o_bytes * R_pad * N_pad,
    )

    out2d = pl.pallas_call(
        _group_pool_kernel,
        out_shape=jax.ShapeDtypeStruct((R_pad, N_pad), out_dtype),
        grid_spec=pltpu.PrefetchScalarGridSpec(
            num_scalar_prefetch=0,
            grid=grid,
            in_specs=[
                pl.BlockSpec((R_pad, C), lambda n: (0, 0)),  # W resident across grid
                pl.BlockSpec((C, tn), lambda n: (0, n)),     # one lane-dense N tile
            ],
            out_specs=pl.BlockSpec((R_pad, tn), lambda n: (0, n)),
        ),
        compiler_params=pltpu.CompilerParams(
            # Single N axis is fully parallel -> shards across v7x's 2 TCs,
            # neutral on v5e/v6e.
            dimension_semantics=("parallel",),
            vmem_limit_bytes=_VMEM_LIMIT_BYTES,
        ),
        cost_estimate=cost,
    )(w, x2d)

    # Strip padding and restore (B, R, T).
    out = out2d[:R, :N].reshape(R, B, T)
    return jnp.transpose(out, (1, 0, 2))


def make_membership(num_channels: int, num_regions: int) -> jax.Array:
    """Deterministic channel->region assignment (channel c -> region c % R)."""
    region_of_channel = jnp.arange(num_channels) % num_regions  # (C,)
    return (
        jnp.arange(num_regions)[:, None] == region_of_channel[None, :]
    ).astype(jnp.float32)  # (R, C)


if __name__ == "__main__":
    # Small shapes consistent with the module: GroupPoolingModule("Mean",
    # num_pooling_modules=4) pooling an 8-channel, 16-sample time series.
    B, C, T = 2, 8, 16
    R = 4  # num_pooling_modules

    key = jax.random.PRNGKey(0)
    x = jax.random.normal(key, (B, C, T), dtype=jnp.float32)
    membership = make_membership(C, R)

    # Reference in plain JAX.
    counts = jnp.maximum(membership.sum(axis=1), 1.0)  # (R,)
    ref = jnp.einsum("rc,bct->brt", membership, x) / counts[None, :, None]

    # f32 path (exact check).
    out = jax.block_until_ready(group_mean_pool(x, membership))
    assert out.shape == (B, R, T)
    assert jnp.allclose(out, ref, atol=1e-5, rtol=1e-5)

    # bf16 compute path (halves HBM read traffic; loose tolerance).
    out_bf16 = jax.block_until_ready(
        group_mean_pool(x, membership, compute_dtype=jnp.bfloat16)
    )
    assert out_bf16.shape == (B, R, T)
    assert jnp.allclose(out_bf16, ref, atol=5e-2, rtol=5e-2)

    print("KERNEL_OK")
</pallas_src>

<mosaic_0001>
module attributes {stable_mosaic.version = 11 : i64} {
  func.func @_group_pool_kernel(%arg0: i32, %arg1: memref<8x8xf32, #tpu.memory_space<vmem>>, %arg2: memref<8x128xf32, #tpu.memory_space<vmem>>, %arg3: memref<8x128xf32, #tpu.memory_space<vmem>>) attributes {dimension_semantics = [#tpu.dimension_semantics<parallel>], iteration_bounds = array<i64: 1>, scalar_prefetch = 0 : i64, scratch_operands = 0 : i64, tpu.core_type = #tpu.core_type<tc>, window_params = [{pipeline_mode = #tpu.pipeline_mode<synchronous>, transform_indices = @transform_0, window_bounds = array<i64: 8, 8>}, {transform_indices = @transform_1, window_bounds = array<i64: 8, 128>}, {transform_indices = @transform_2, window_bounds = array<i64: 8, 128>}]} {
    %c0 = arith.constant 0 : index
    %c0_0 = arith.constant 0 : index
    %0 = vector.load %arg1[%c0, %c0_0] : memref<8x8xf32, #tpu.memory_space<vmem>>, vector<8x8xf32>
    %c0_1 = arith.constant 0 : index
    %c0_2 = arith.constant 0 : index
    %1 = vector.load %arg2[%c0_1, %c0_2] : memref<8x128xf32, #tpu.memory_space<vmem>>, vector<8x128xf32>
    %cst = arith.constant dense<0.000000e+00> : vector<8x128xf32>
    %2 = tpu.matmul %0, %1, %cst {dimension_numbers = #tpu.dot_dimension_numbers<[1], [0], [0], [1], [0, 0, 1, 1], [], []>} : vector<8x8xf32>, vector<8x128xf32>, vector<8x128xf32> -> vector<8x128xf32>
    %c0_3 = arith.constant 0 : index
    %c0_4 = arith.constant 0 : index
    %3 = vector.load %arg3[%c0_3, %c0_4] : memref<8x128xf32, #tpu.memory_space<vmem>>, vector<8x128xf32>
    tpu.vector_store %arg3[%c0_3, %c0_4], %2 {strides = array<i32>} : memref<8x128xf32, #tpu.memory_space<vmem>>, vector<8x128xf32>,
    return
  }
  func.func @transform_0(%arg0: i32) -> (i32, i32) {
    %c0_i32 = arith.constant 0 : i32
    %c0_i32_0 = arith.constant 0 : i32
    %c0_i32_1 = arith.constant 0 : i32
    return %c0_i32, %c0_i32_0 : i32, i32
  }
  func.func @transform_1(%arg0: i32) -> (i32, i32) {
    %c0_i32 = arith.constant 0 : i32
    %c0_i32_0 = arith.constant 0 : i32
    return %c0_i32, %arg0 : i32, i32
  }
  func.func @transform_2(%arg0: i32) -> (i32, i32) {
    %c0_i32 = arith.constant 0 : i32
    %c0_i32_0 = arith.constant 0 : i32
    return %c0_i32, %arg0 : i32, i32
  }
}

</mosaic_0001>

<llo_original>
// kernel: tpu_custom_call.1
$region0: #{tpu_custom_call.1}
  #allocation0 [shape = 'u32[]', space=smem, size = 0x4, offset = 0x4, fixed_abs, tag = 'smem constant byte address 0x4 - core index']
  #allocation1 [shape = 'u32[144,128]{1,0:T(1,128)}', space=vmem, size = 0x12000, scoped, tag = 'internal scratch']
  %s0 = inlined_call_operand.hbm [shape: f32[8,8], index: 0, kind: input, shape index: {}]
  %s1 = inlined_call_operand.hbm [shape: f32[8,128], index: 1, kind: input, shape index: {}]
  %s2 = inlined_call_operand.hbm [shape: f32[8,128], index: 2, kind: output, shape index: {}]
  %s3 = sld [smem:[#allocation0]]
  $region26: #{tpu_custom_call.1} parent=0
    _
  %s5 = ssub.s32 1, %s3
  %s6 = scalar_select 0, %s5, %s3
  $region1: #{tpu_custom_call.1} parent=0
    #allocation2 [shape = 'u8[4096]{0}', space=vmem, size = 0x1000, scoped, tag = 'input window, operand 0, single buffered']
    #allocation3 [shape = 's32[1]{0}', space=sflag, size = 0x4, scoped, tag = 'scoped memory for tpu_custom_call.1']
    #allocation4 [shape = 's32[1]{0}', space=sflag, size = 0x4, scoped, tag = 'scoped memory for tpu_custom_call.1']
    #allocation5 [shape = 'u8[4096]{0}', space=vmem, size = 0x1000, scoped, tag = 'input window, operand 1, single buffered']
    #allocation6 [shape = 's32[1]{0}', space=sflag, size = 0x4, scoped, tag = 'scoped memory for tpu_custom_call.1']
    #allocation7 [shape = 'u8[4096]{0}', space=vmem, size = 0x1000, scoped, tag = 'output window, operand 0, single buffered']
    %7 = vsyncpa [#allocation3], 0
    %8 = vsyncpa [#allocation6], 0
    %9 = vsyncpa [#allocation4], 0
    // Predicated region
    $region2: #{tpu_custom_call.1} parent=1 // pred_check
      _
    $region3: #{tpu_custom_call.1} parent=1 // pred_check_branch
      %11 = sbr.rel (0) target = $region5
    $region4: #{tpu_custom_call.1} parent=1 // pred_region
      %s13 = ssub.s32 128, 128
      %14 = vsyncadd [#allocation3], %s13
      %s16 = sshll.u32 [#allocation2], 4
      %s17 = int_to_ptr.vmem [resolvable:$true] %s16
      %19 = dma.hbm_to_vmem [thread:$0]  %s0, 128, %s17, [#allocation3]
    $region5: #{tpu_custom_call.1} parent=1 // pred_fallthru
      _
    // Predicated region
    $region6: #{tpu_custom_call.1} parent=1 // pred_check
      _
    $region7: #{tpu_custom_call.1} parent=1 // pred_check_branch
      %21 = sbr.rel (0) target = $region9
    $region8: #{tpu_custom_call.1} parent=1 // pred_region
      %s23 = ssub.s32 128, 128
      %24 = vsyncadd [#allocation6], %s23
      %s26 = sshll.u32 [#allocation5], 4
      %s27 = int_to_ptr.vmem [resolvable:$true] %s26
      %29 = dma.hbm_to_vmem [thread:$0]  %s1, 128, %s27, [#allocation6]
    $region9: #{tpu_custom_call.1} parent=1 // pred_fallthru
      _
    // Predicated region
    $region10: #{tpu_custom_call.1} parent=1 // pred_check
      _
    $region11: #{tpu_custom_call.1} parent=1 // pred_check_branch
      %31 = sbr.rel (0) target = $region13
    $region12: #{tpu_custom_call.1} parent=1 // pred_region
      %32 = dma.done [#allocation3], 128
    $region13: #{tpu_custom_call.1} parent=1 // pred_fallthru
      _
    // Predicated region
    $region14: #{tpu_custom_call.1} parent=1 // pred_check
      _
    $region15: #{tpu_custom_call.1} parent=1 // pred_check_branch
      %34 = sbr.rel (0) target = $region17
    $region16: #{tpu_custom_call.1} parent=1 // pred_region
      %35 = dma.done [#allocation6], 128
    $region17: #{tpu_custom_call.1} parent=1 // pred_fallthru
      _
    %v36 = vld [vmem:[#allocation2] sm:$0xff]
    %v37 = vld [vmem:[#allocation5] sm:$0xff]
    %vm38 = vcmask 64512
    %v40 = vsel %vm38, %v36, 0
    %42 = vmatprep.subr.mxu0 0.0
    %43 = vmatpush1.msra.mxu0 %v37
    %44 = vmatprep.subr.mxu0 0.0
    %45 = vmatpush1.msra.mxu0 0.0
    %46 = vmatprep.subr.mxu0 0.0
    %47 = vmatpush1.msra.mxu0 0.0
    %48 = vmatprep.subr.mxu0 0.0
    %49 = vmatpush1.msra.mxu0 0.0
    %50 = vmatprep.subr.mxu0 0.0
    %51 = vmatpush1.msra.mxu0 0.0
    %52 = vmatprep.subr.mxu0 0.0
    %53 = vmatpush1.msra.mxu0 0.0
    %54 = vmatprep.subr.mxu0 0.0
    %55 = vmatpush1.msra.mxu0 0.0
    %56 = vmatprep.subr.mxu0 0.0
    %57 = vmatpush1.msra.mxu0 0.0
    %58 = vmatprep.subr.mxu0 0.0
    %59 = vmatpush1.msra.mxu0 0.0
    %60 = vmatprep.subr.mxu0 0.0
    %61 = vmatpush1.msra.mxu0 0.0
    %62 = vmatprep.subr.mxu0 0.0
    %63 = vmatpush1.msra.mxu0 0.0
    %64 = vmatprep.subr.mxu0 0.0
    %65 = vmatpush1.msra.mxu0 0.0
    %66 = vmatprep.subr.mxu0 0.0
    %67 = vmatpush1.msra.mxu0 0.0
    %68 = vmatprep.subr.mxu0 0.0
    %69 = vmatpush1.msra.mxu0 0.0
    %70 = vmatprep.subr.mxu0 0.0
    %71 = vmatpush1.msra.mxu0 0.0
    %72 = vmatprep.subr.mxu0 0.0
    %73 = vmatpush1.msra.mxu0 0.0
    %74 = vmatprep.subr.mxu0 0.0
    %75 = vmatpush1.msra.mxu0 0.0
    %76 = vmatprep.subr.mxu0 0.0
    %77 = vmatpush1.msra.mxu0 0.0
    %78 = vmatprep.subr.mxu0 0.0
    %79 = vmatpush1.msra.mxu0 0.0
    %80 = vmatprep.subr.mxu0 0.0
    %81 = vmatpush1.msra.mxu0 0.0
    %82 = vmatprep.subr.mxu0 0.0
    %83 = vmatpush1.msra.mxu0 0.0
    %84 = vmatprep.subr.mxu0 0.0
    %85 = vmatpush1.msra.mxu0 0.0
    %86 = vmatprep.subr.mxu0 0.0
    %87 = vmatpush1.msra.mxu0 0.0
    %88 = vmatprep.subr.mxu0 0.0
    %89 = vmatpush1.msra.mxu0 0.0
    %90 = vmatprep.subr.mxu0 0.0
    %91 = vmatpush1.msra.mxu0 0.0
    %92 = vmatprep.subr.mxu0 0.0
    %93 = vmatpush1.msra.mxu0 0.0
    %94 = vmatprep.subr.mxu0 0.0
    %95 = vmatpush1.msra.mxu0 0.0
    %96 = vmatprep.subr.mxu0 0.0
    %97 = vmatpush1.msra.mxu0 0.0
    %98 = vmatprep.subr.mxu0 0.0
    %99 = vmatpush1.msra.mxu0 0.0
    %100 = vmatprep.subr.mxu0 0.0
    %101 = vmatpush1.msra.mxu0 0.0
    %102 = vmatprep.subr.mxu0 0.0
    %103 = vmatpush1.msra.mxu0 0.0
    %104 = vmatprep.subr.mxu0 0.0
    %105 = vmatpush1.msra.mxu0 0.0
    %106 = vmatprep.mubr.f32.mxu0 0.0
    %107 = vmatmul.mubr.f32.gmra.mrb[0].mxu0 %v40
    %v108 = vpop.f32.mrb[0].mxu0
    %v109 = vadd.f32 0.0, %v108
    %v110 = vpop.f32.mrb[0].mxu0
    %111 = vdwg.mxu0
    %112 = vst [vmem:[#allocation7] sm:$0xff] %v109
    // Predicated region
    $region18: #{tpu_custom_call.1} parent=1 // pred_check
      _
    $region19: #{tpu_custom_call.1} parent=1 // pred_check_branch
      %114 = sbr.rel (0) target = $region21
    $region20: #{tpu_custom_call.1} parent=1 // pred_region
      %s116 = ssub.s32 128, 128
      %117 = vsyncadd [#allocation4], %s116
      %s119 = sshll.u32 [#allocation7], 4
      %s120 = int_to_ptr.vmem [resolvable:$true] %s119
      %122 = dma.vmem_to_hbm [thread:$0]  %s120, 128, %s2, [#allocation4]
    $region21: #{tpu_custom_call.1} parent=1 // pred_fallthru
      _
    // Predicated region
    $region22: #{tpu_custom_call.1} parent=1 // pred_check
      _
    $region23: #{tpu_custom_call.1} parent=1 // pred_check_branch
      %124 = sbr.rel (0) target = $region25
    $region24: #{tpu_custom_call.1} parent=1 // pred_region
      %125 = dma.done [#allocation4], 128
    $region25: #{tpu_custom_call.1} parent=1 // pred_fallthru
      _
    %126 = vsyncpa [#allocation3], 1
    %127 = vsyncpa [#allocation6], 1
    %128 = vsyncpa [#allocation4], 1

</llo_original>
